<compile_context>
chip_gen: v7x
topology: tpu7x:2x2x1
jax: 0.10.0
libtpu: 0.0.40
codegen_flags: <defaults>
</compile_context>

<pallas_src>
import jax
import jax.numpy as jnp
import numpy as np
from jax.experimental import pallas as pl
from jax.experimental.pallas import tpu as pltpu

_LANE = 128
_SUBLANE = 8
_N_BUCKET = 64        # coarse node-count bucket -> stable static shapes


def _round_up(n, m):
    return ((n + m - 1) // m) * m


def _pad2(a, rows, cols):
    return jnp.pad(a, ((0, rows - a.shape[0]), (0, cols - a.shape[1])))


def _delta_kernel(seg_ref, signs_ref, x_ref, w1_ref, b1_ref, w2_ref, b2_ref,
                  w3_ref, b3_ref, out_ref):
    """Representation + segment pooling + energy MLP + signed delta, one shot."""
    # Representation: per-node Linear + ReLU  ->  (N_total, H_P)
    h = jnp.dot(x_ref[...], w1_ref[...], preferred_element_type=jnp.float32)
    h = jnp.maximum(h + b1_ref[...], 0.0)

    # Per-system sum pooling as an MXU matmul with a 0/1 segment matrix.
    # Padded node rows and padded system rows are all-zero in `seg`, so they
    # contribute nothing (no explicit row mask needed).
    pooled = jnp.dot(seg_ref[...], h, preferred_element_type=jnp.float32)   # (S_PAD, H_P)

    # Energy MLP: Linear + ReLU, then VPU multiply + lane reduce against w3 row.
    h2 = jnp.dot(pooled, w2_ref[...], preferred_element_type=jnp.float32)
    h2 = jnp.maximum(h2 + b2_ref[...], 0.0)
    e = jnp.sum(h2 * w3_ref[...], axis=1, keepdims=True) + b3_ref[...]      # (S_PAD, 1)

    # Delta strategy: signs = (+1, -1, ..., -1, 0-pad).  Padded system slots
    # have sign 0, so their (nonzero) relu(b2)-derived energy never leaks in.
    out_ref[...] = jnp.sum(signs_ref[...] * e, axis=0, keepdims=True)       # (1, 1)


@jax.jit
def _forward_impl(systems, w1, b1, w2, b2, w3, b3):
    """Pad/stack the systems, build constant seg/signs, run ONE pallas_call."""
    n_sys = len(systems)
    s_pad = _round_up(n_sys, _SUBLANE)
    din_p = w1.shape[0]
    buckets = [_round_up(max(s.shape[0], 1), _N_BUCKET) for s in systems]
    n_tot = int(sum(buckets))

    # One (N_total, DIN_P) slab: each system's rows zero-padded to its bucket.
    xs = jnp.concatenate(
        [_pad2(s, b, din_p) for s, b in zip(systems, buckets)], axis=0)

    # Segment-sum matrix and sign column depend only on static shapes, so they
    # are baked in as XLA constants (zero per-call runtime cost).
    seg_np = np.zeros((s_pad, n_tot), np.float32)
    off = 0
    for i, (s, b) in enumerate(zip(systems, buckets)):
        seg_np[i, off:off + s.shape[0]] = 1.0
        off += b
    signs_np = np.zeros((s_pad, 1), np.float32)
    signs_np[0, 0] = 1.0
    signs_np[1:n_sys, 0] = -1.0

    vmem = lambda: pl.BlockSpec(memory_space=pltpu.MemorySpace.VMEM)
    out = pl.pallas_call(
        _delta_kernel,
        out_shape=jax.ShapeDtypeStruct((1, 1), jnp.float32),
        in_specs=[vmem() for _ in range(9)],   # whole arrays, resident in VMEM
        out_specs=vmem(),
    )(jnp.asarray(seg_np), jnp.asarray(signs_np), xs, w1, b1, w2, b2, w3, b3)
    return out[0, 0]


class PallasModel:
    """JAX/Pallas equivalent of mtenn.model.Model with the Delta strategy."""

    def __init__(self, in_dim, hidden, key):
        k1, k2, k3, k4, k5 = jax.random.split(key, 5)
        s1 = 1.0 / np.sqrt(in_dim)
        s2 = 1.0 / np.sqrt(hidden)
        # Logical (unpadded) parameters.
        self.in_dim, self.hidden = in_dim, hidden
        self.w1 = jax.random.uniform(k1, (in_dim, hidden), jnp.float32, -s1, s1)
        self.b1 = jax.random.uniform(k4, (1, hidden), jnp.float32, -s1, s1)
        self.w2 = jax.random.uniform(k2, (hidden, hidden), jnp.float32, -s2, s2)
        self.b2 = jax.random.uniform(k5, (1, hidden), jnp.float32, -s2, s2)
        self.w3 = jax.random.uniform(k3, (hidden, 1), jnp.float32, -s2, s2)
        self.b3 = jnp.zeros((1, 1), jnp.float32)

        # Kernel-layout parameters: hidden lane-padded to 128, in_dim (the
        # contraction dim of x@w1) only padded to a multiple of 8 (sublane).
        # Padded regions MUST be exactly zero for the lane-padded path.
        self.din_p = _round_up(in_dim, _SUBLANE)
        self.h_p = _round_up(hidden, _LANE)
        self.w1_p = _pad2(self.w1, self.din_p, self.h_p)
        self.b1_p = _pad2(self.b1, 1, self.h_p)
        self.w2_p = _pad2(self.w2, self.h_p, self.h_p)
        self.b2_p = _pad2(self.b2, 1, self.h_p)
        self.w3_p = _pad2(self.w3.T, 1, self.h_p)   # stored as a (1, H_P) row
        self.b3_p = self.b3

    def __call__(self, comp, *parts):
        # forward(comp, *parts) -> E(complex) - sum_i E(part_i)
        systems = (comp,) + tuple(parts)
        return _forward_impl(systems, self.w1_p, self.b1_p, self.w2_p,
                             self.b2_p, self.w3_p, self.b3_p)

    # pure-JAX reference (unpadded weights) for validation
    def reference(self, comp, *parts):
        def e(x):
            h = jnp.maximum(x @ self.w1 + self.b1, 0.0)
            pooled = jnp.sum(h, axis=0, keepdims=True)
            h2 = jnp.maximum(pooled @ self.w2 + self.b2, 0.0)
            return (h2 @ self.w3 + self.b3)[0, 0]

        out = e(comp)
        for p in parts:
            out = out - e(p)
        return out


if __name__ == "__main__":
    key = jax.random.PRNGKey(0)
    k_model, k_comp, k_p1, k_p2 = jax.random.split(key, 4)

    in_dim, hidden = 32, 32
    model = PallasModel(in_dim, hidden, k_model)

    # complex (protein+ligand) and its two constituent parts
    comp = jax.random.normal(k_comp, (16, in_dim), jnp.float32)
    part1 = jax.random.normal(k_p1, (8, in_dim), jnp.float32)
    part2 = jax.random.normal(k_p2, (8, in_dim), jnp.float32)

    out = model(comp, part1, part2)
    out = jax.block_until_ready(out)

    ref = model.reference(comp, part1, part2)
    np.testing.assert_allclose(np.asarray(out), np.asarray(ref),
                               rtol=1e-5, atol=1e-5)
    print("KERNEL_OK")
</pallas_src>

<mosaic_0001>
module attributes {stable_mosaic.version = 11 : i64} {
  func.func @_delta_kernel(%arg0: memref<8x192xf32, #tpu.memory_space<vmem>>, %arg1: memref<8x1xf32, #tpu.memory_space<vmem>>, %arg2: memref<192x32xf32, #tpu.memory_space<vmem>>, %arg3: memref<32x128xf32, #tpu.memory_space<vmem>>, %arg4: memref<1x128xf32, #tpu.memory_space<vmem>>, %arg5: memref<128x128xf32, #tpu.memory_space<vmem>>, %arg6: memref<1x128xf32, #tpu.memory_space<vmem>>, %arg7: memref<1x128xf32, #tpu.memory_space<vmem>>, %arg8: memref<1x1xf32, #tpu.memory_space<vmem>>, %arg9: memref<1x1xf32, #tpu.memory_space<vmem>>) attributes {dimension_semantics = [], scalar_prefetch = 0 : i64, scratch_operands = 0 : i64, tpu.core_type = #tpu.core_type<tc>} {
    %c0 = arith.constant 0 : index
    %c0_0 = arith.constant 0 : index
    %0 = vector.load %arg2[%c0, %c0_0] : memref<192x32xf32, #tpu.memory_space<vmem>>, vector<192x32xf32>
    %c0_1 = arith.constant 0 : index
    %c0_2 = arith.constant 0 : index
    %1 = vector.load %arg3[%c0_1, %c0_2] : memref<32x128xf32, #tpu.memory_space<vmem>>, vector<32x128xf32>
    %cst = arith.constant dense<0.000000e+00> : vector<192x128xf32>
    %2 = tpu.matmul %0, %1, %cst {dimension_numbers = #tpu.dot_dimension_numbers<[1], [0], [0], [1], [0, 0, 1, 1], [], []>} : vector<192x32xf32>, vector<32x128xf32>, vector<192x128xf32> -> vector<192x128xf32>
    %c0_3 = arith.constant 0 : index
    %c0_4 = arith.constant 0 : index
    %3 = vector.load %arg4[%c0_3, %c0_4] : memref<1x128xf32, #tpu.memory_space<vmem>>, vector<1x128xf32>
    %4 = vector.broadcast %3 : vector<1x128xf32> to vector<192x128xf32>
    %5 = arith.addf %2, %4 : vector<192x128xf32>
    %cst_5 = arith.constant 0.000000e+00 : f32
    %6 = vector.broadcast %cst_5 : f32 to vector<192x128xf32>
    %7 = arith.maximumf %5, %6 : vector<192x128xf32>
    %c0_6 = arith.constant 0 : index
    %c0_7 = arith.constant 0 : index
    %8 = vector.load %arg0[%c0_6, %c0_7] : memref<8x192xf32, #tpu.memory_space<vmem>>, vector<8x192xf32>
    %cst_8 = arith.constant dense<0.000000e+00> : vector<8x128xf32>
    %9 = tpu.matmul %8, %7, %cst_8 {dimension_numbers = #tpu.dot_dimension_numbers<[1], [0], [0], [1], [0, 0, 1, 1], [], []>} : vector<8x192xf32>, vector<192x128xf32>, vector<8x128xf32> -> vector<8x128xf32>
    %c0_9 = arith.constant 0 : index
    %c0_10 = arith.constant 0 : index
    %10 = vector.load %arg5[%c0_9, %c0_10] : memref<128x128xf32, #tpu.memory_space<vmem>>, vector<128x128xf32>
    %cst_11 = arith.constant dense<0.000000e+00> : vector<8x128xf32>
    %11 = tpu.matmul %9, %10, %cst_11 {dimension_numbers = #tpu.dot_dimension_numbers<[1], [0], [0], [1], [0, 0, 1, 1], [], []>} : vector<8x128xf32>, vector<128x128xf32>, vector<8x128xf32> -> vector<8x128xf32>
    %c0_12 = arith.constant 0 : index
    %c0_13 = arith.constant 0 : index
    %12 = vector.load %arg6[%c0_12, %c0_13] : memref<1x128xf32, #tpu.memory_space<vmem>>, vector<1x128xf32>
    %13 = vector.broadcast %12 : vector<1x128xf32> to vector<8x128xf32>
    %14 = arith.addf %11, %13 : vector<8x128xf32>
    %cst_14 = arith.constant 0.000000e+00 : f32
    %15 = vector.broadcast %cst_14 : f32 to vector<8x128xf32>
    %16 = arith.maximumf %14, %15 : vector<8x128xf32>
    %c0_15 = arith.constant 0 : index
    %c0_16 = arith.constant 0 : index
    %17 = vector.load %arg7[%c0_15, %c0_16] : memref<1x128xf32, #tpu.memory_space<vmem>>, vector<1x128xf32>
    %18 = vector.broadcast %17 : vector<1x128xf32> to vector<8x128xf32>
    %19 = arith.mulf %16, %18 : vector<8x128xf32>
    %cst_17 = arith.constant dense<0.000000e+00> : vector<8xf32>
    %20 = vector.multi_reduction <add>, %19, %cst_17 [1] : vector<8x128xf32> to vector<8xf32>
    %21 = vector.shape_cast %20 : vector<8xf32> to vector<8x1xf32>
    %c0_18 = arith.constant 0 : index
    %c0_19 = arith.constant 0 : index
    %22 = vector.load %arg8[%c0_18, %c0_19] : memref<1x1xf32, #tpu.memory_space<vmem>>, vector<1x1xf32>
    %23 = vector.broadcast %22 : vector<1x1xf32> to vector<8x1xf32>
    %24 = arith.addf %21, %23 : vector<8x1xf32>
    %c0_20 = arith.constant 0 : index
    %c0_21 = arith.constant 0 : index
    %25 = vector.load %arg1[%c0_20, %c0_21] : memref<8x1xf32, #tpu.memory_space<vmem>>, vector<8x1xf32>
    %26 = arith.mulf %25, %24 : vector<8x1xf32>
    %cst_22 = arith.constant dense<0.000000e+00> : vector<1xf32>
    %27 = vector.multi_reduction <add>, %26, %cst_22 [0] : vector<8x1xf32> to vector<1xf32>
    %28 = vector.shape_cast %27 : vector<1xf32> to vector<1x1xf32>
    %c0_23 = arith.constant 0 : index
    %c0_24 = arith.constant 0 : index
    %29 = vector.load %arg9[%c0_23, %c0_24] : memref<1x1xf32, #tpu.memory_space<vmem>>, vector<1x1xf32>
    tpu.vector_store %arg9[%c0_23, %c0_24], %28 {strides = array<i32>} : memref<1x1xf32, #tpu.memory_space<vmem>>, vector<1x1xf32>,
    return
  }
}

</mosaic_0001>

<llo_original>
// kernel: _forward_impl.1
$region0: #{_forward_impl.1}
  #allocation0 [shape = 'u32[]', space=smem, size = 0x4, offset = 0x4, fixed_abs, tag = 'smem constant byte address 0x4 - core index']
  #allocation1 [shape = 'u32[144,128]{1,0:T(1,128)}', space=vmem, size = 0x12000, scoped, tag = 'internal scratch']
  #allocation2 [shape = 'f32[1,1]{1,0:T(1,128)S(1)}', space=vmem, size = 0x200, scoped, tag = 'scoped memory for _forward_impl.1']
  %s0 = inlined_call_operand.vmem [shape: f32[8,192], index: 0, kind: input, shape index: {}]
  %s1 = inlined_call_operand.vmem [shape: f32[8,1], index: 1, kind: input, shape index: {}]
  %s2 = inlined_call_operand.vmem [shape: f32[192,32], index: 2, kind: input, shape index: {}]
  %s3 = inlined_call_operand.vmem [shape: f32[32,128], index: 3, kind: input, shape index: {}]
  %s4 = inlined_call_operand.vmem [shape: f32[1,128], index: 4, kind: input, shape index: {}]
  %s5 = inlined_call_operand.vmem [shape: f32[128,128], index: 5, kind: input, shape index: {}]
  %s6 = inlined_call_operand.vmem [shape: f32[1,128], index: 6, kind: input, shape index: {}]
  %s7 = inlined_call_operand.vmem [shape: f32[1,128], index: 7, kind: input, shape index: {}]
  %s8 = inlined_call_operand.<no memory space> [shape: f32[1,1], index: 8, kind: input, shape index: {}]
  %s9 = inlined_call_operand.hbm [shape: f32[1,1], index: 9, kind: output, shape index: {}]
  %s10 = sld [smem:[#allocation0]]
  $region46: #{_forward_impl.1} parent=0
    _
  %s12 = ssub.s32 1, %s10
  %s13 = scalar_select 0, %s12, %s10
  %v14 = vstv %s8
  %15 = vst [vmem:[#allocation2] sm:$0x1] %v14
  $region1: #{_forward_impl.1} parent=0
    #allocation3 [shape = 'u8[512]{0}', space=vmem, size = 0x400, scoped, tag = 'output window, operand 0, single buffered']
    #allocation4 [shape = 's32[1]{0}', space=sflag, size = 0x4, scoped, tag = 'scoped memory for _forward_impl.1']
    %16 = vsyncpa [#allocation4], 0
    // Predicated region
    $region2: #{_forward_impl.1} parent=1 // pred_check
      _
    $region3: #{_forward_impl.1} parent=1 // pred_check_branch
      %18 = sbr.rel (0) target = $region5
    $region4: #{_forward_impl.1} parent=1 // pred_region
      _
    $region5: #{_forward_impl.1} parent=1 // pred_fallthru
      _
    // Predicated region
    $region6: #{_forward_impl.1} parent=1 // pred_check
      _
    $region7: #{_forward_impl.1} parent=1 // pred_check_branch
      %20 = sbr.rel (0) target = $region9
    $region8: #{_forward_impl.1} parent=1 // pred_region
      _
    $region9: #{_forward_impl.1} parent=1 // pred_fallthru
      _
    // Predicated region
    $region10: #{_forward_impl.1} parent=1 // pred_check
      _
    $region11: #{_forward_impl.1} parent=1 // pred_check_branch
      %22 = sbr.rel (0) target = $region13
    $region12: #{_forward_impl.1} parent=1 // pred_region
      _
    $region13: #{_forward_impl.1} parent=1 // pred_fallthru
      _
    // Predicated region
    $region14: #{_forward_impl.1} parent=1 // pred_check
      _
    $region15: #{_forward_impl.1} parent=1 // pred_check_branch
      %24 = sbr.rel (0) target = $region17
    $region16: #{_forward_impl.1} parent=1 // pred_region
      _
    $region17: #{_forward_impl.1} parent=1 // pred_fallthru
      _
    // Predicated region
    $region18: #{_forward_impl.1} parent=1 // pred_check
      _
    $region19: #{_forward_impl.1} parent=1 // pred_check_branch
      %26 = sbr.rel (0) target = $region21
    $region20: #{_forward_impl.1} parent=1 // pred_region
      _
    $region21: #{_forward_impl.1} parent=1 // pred_fallthru
      _
    // Predicated region
    $region22: #{_forward_impl.1} parent=1 // pred_check
      _
    $region23: #{_forward_impl.1} parent=1 // pred_check_branch
      %28 = sbr.rel (0) target = $region25
    $region24: #{_forward_impl.1} parent=1 // pred_region
      _
    $region25: #{_forward_impl.1} parent=1 // pred_fallthru
      _
    // Predicated region
    $region26: #{_forward_impl.1} parent=1 // pred_check
      _
    $region27: #{_forward_impl.1} parent=1 // pred_check_branch
      %30 = sbr.rel (0) target = $region29
    $region28: #{_forward_impl.1} parent=1 // pred_region
      _
    $region29: #{_forward_impl.1} parent=1 // pred_fallthru
      _
    // Predicated region
    $region30: #{_forward_impl.1} parent=1 // pred_check
      _
    $region31: #{_forward_impl.1} parent=1 // pred_check_branch
      %32 = sbr.rel (0) target = $region33
    $region32: #{_forward_impl.1} parent=1 // pred_region
      _
    $region33: #{_forward_impl.1} parent=1 // pred_fallthru
      _
    // Predicated region
    $region34: #{_forward_impl.1} parent=1 // pred_check
      _
    $region35: #{_forward_impl.1} parent=1 // pred_check_branch
      %34 = sbr.rel (0) target = $region37
    $region36: #{_forward_impl.1} parent=1 // pred_region
      _
    $region37: #{_forward_impl.1} parent=1 // pred_fallthru
      _
    %v35 = vld [vmem:[%s2] sm:$0xff]
    %v36 = vld [vmem:[%s2 + $0x8] sm:$0xff]
    %v37 = vld [vmem:[%s2 + $0x10] sm:$0xff]
    %v38 = vld [vmem:[%s2 + $0x18] sm:$0xff]
    %v39 = vld [vmem:[%s2 + $0x20] sm:$0xff]
    %v40 = vld [vmem:[%s2 + $0x28] sm:$0xff]
    %v41 = vld [vmem:[%s2 + $0x30] sm:$0xff]
    %v42 = vld [vmem:[%s2 + $0x38] sm:$0xff]
    %v43 = vld [vmem:[%s2 + $0x40] sm:$0xff]
    %v44 = vld [vmem:[%s2 + $0x48] sm:$0xff]
    %v45 = vld [vmem:[%s2 + $0x50] sm:$0xff]
    %v46 = vld [vmem:[%s2 + $0x58] sm:$0xff]
    %v47 = vld [vmem:[%s2 + $0x60] sm:$0xff]
    %v48 = vld [vmem:[%s2 + $0x68] sm:$0xff]
    %v49 = vld [vmem:[%s2 + $0x70] sm:$0xff]
    %v50 = vld [vmem:[%s2 + $0x78] sm:$0xff]
    %v51 = vld [vmem:[%s2 + $0x80] sm:$0xff]
    %v52 = vld [vmem:[%s2 + $0x88] sm:$0xff]
    %v53 = vld [vmem:[%s2 + $0x90] sm:$0xff]
    %v54 = vld [vmem:[%s2 + $0x98] sm:$0xff]
    %v55 = vld [vmem:[%s2 + $0xa0] sm:$0xff]
    %v56 = vld [vmem:[%s2 + $0xa8] sm:$0xff]
    %v57 = vld [vmem:[%s2 + $0xb0] sm:$0xff]
    %v58 = vld [vmem:[%s2 + $0xb8] sm:$0xff]
    %v59 = vld [vmem:[%s3] sm:$0xff]
    %v60 = vld [vmem:[%s3 + $0x8] sm:$0xff]
    %v61 = vld [vmem:[%s3 + $0x10] sm:$0xff]
    %v62 = vld [vmem:[%s3 + $0x18] sm:$0xff]
    %v63 = vld [vmem:[%s4] sm:$0x1]
    %v65 = vlaneseq
    %v66 = vshrl.u32 %v65, 7
    %v67 = vsub.s32 0, %v66
    %v68 = vrot.slane %v63, %v67
    %vm70 = vcmask 261120
    %v72 = vsel %vm70, %v35, 0
    %v75 = vsel %vm70, %v36, 0
    %v78 = vsel %vm70, %v37, 0
    %v81 = vsel %vm70, %v38, 0
    %v84 = vsel %vm70, %v39, 0
    %v87 = vsel %vm70, %v40, 0
    %v90 = vsel %vm70, %v41, 0
    %v93 = vsel %vm70, %v42, 0
    %v96 = vsel %vm70, %v43, 0
    %v99 = vsel %vm70, %v44, 0
    %v102 = vsel %vm70, %v45, 0
    %v105 = vsel %vm70, %v46, 0
    %v108 = vsel %vm70, %v47, 0
    %v111 = vsel %vm70, %v48, 0
    %v114 = vsel %vm70, %v49, 0
    %v117 = vsel %vm70, %v50, 0
    %v120 = vsel %vm70, %v51, 0
    %v123 = vsel %vm70, %v52, 0
    %v126 = vsel %vm70, %v53, 0
    %v129 = vsel %vm70, %v54, 0
    %v132 = vsel %vm70, %v55, 0
    %v135 = vsel %vm70, %v56, 0
    %v138 = vsel %vm70, %v57, 0
    %v141 = vsel %vm70, %v58, 0
    %143 = vmatprep.subr.mxu0 0.0
    %144 = vmatpush1.msra.mxu0 %v59
    %145 = vmatprep.subr.mxu0 0.0
    %146 = vmatpush1.msra.mxu0 %v60
    %147 = vmatprep.subr.mxu0 0.0
    %148 = vmatpush1.msra.mxu0 %v61
    %149 = vmatprep.subr.mxu0 0.0
    %150 = vmatpush1.msra.mxu0 %v62
    %151 = vmatprep.subr.mxu0 0.0
    %152 = vmatpush1.msra.mxu0 0.0
    %153 = vmatprep.subr.mxu0 0.0
    %154 = vmatpush1.msra.mxu0 0.0
    %155 = vmatprep.subr.mxu0 0.0
    %156 = vmatpush1.msra.mxu0 0.0
    %157 = vmatprep.subr.mxu0 0.0
    %158 = vmatpush1.msra.mxu0 0.0
    %159 = vmatprep.subr.mxu0 0.0
    %160 = vmatpush1.msra.mxu0 0.0
    %161 = vmatprep.subr.mxu0 0.0
    %162 = vmatpush1.msra.mxu0 0.0
    %163 = vmatprep.subr.mxu0 0.0
    %164 = vmatpush1.msra.mxu0 0.0
    %165 = vmatprep.subr.mxu0 0.0
    %166 = vmatpush1.msra.mxu0 0.0
    %167 = vmatprep.subr.mxu0 0.0
    %168 = vmatpush1.msra.mxu0 0.0
    %169 = vmatprep.subr.mxu0 0.0
    %170 = vmatpush1.msra.mxu0 0.0
    %171 = vmatprep.subr.mxu0 0.0
    %172 = vmatpush1.msra.mxu0 0.0
    %173 = vmatprep.subr.mxu0 0.0
    %174 = vmatpush1.msra.mxu0 0.0
    %175 = vmatprep.subr.mxu0 0.0
    %176 = vmatpush1.msra.mxu0 0.0
    %177 = vmatprep.subr.mxu0 0.0
    %178 = vmatpush1.msra.mxu0 0.0
    %179 = vmatprep.subr.mxu0 0.0
    %180 = vmatpush1.msra.mxu0 0.0
    %181 = vmatprep.subr.mxu0 0.0
    %182 = vmatpush1.msra.mxu0 0.0
    %183 = vmatprep.subr.mxu0 0.0
    %184 = vmatpush1.msra.mxu0 0.0
    %185 = vmatprep.subr.mxu0 0.0
    %186 = vmatpush1.msra.mxu0 0.0
    %187 = vmatprep.subr.mxu0 0.0
    %188 = vmatpush1.msra.mxu0 0.0
    %189 = vmatprep.subr.mxu0 0.0
    %190 = vmatpush1.msra.mxu0 0.0
    %191 = vmatprep.subr.mxu0 0.0
    %192 = vmatpush1.msra.mxu0 0.0
    %193 = vmatprep.subr.mxu0 0.0
    %194 = vmatpush1.msra.mxu0 0.0
    %195 = vmatprep.subr.mxu0 0.0
    %196 = vmatpush1.msra.mxu0 0.0
    %197 = vmatprep.subr.mxu0 0.0
    %198 = vmatpush1.msra.mxu0 0.0
    %199 = vmatprep.subr.mxu0 0.0
    %200 = vmatpush1.msra.mxu0 0.0
    %201 = vmatprep.subr.mxu0 0.0
    %202 = vmatpush1.msra.mxu0 0.0
    %203 = vmatprep.subr.mxu0 0.0
    %204 = vmatpush1.msra.mxu0 0.0
    %205 = vmatprep.subr.mxu0 0.0
    %206 = vmatpush1.msra.mxu0 0.0
    %207 = vmatprep.mubr.f32.mxu0 0.0
    %208 = vmatmul.mubr.f32.gmra.mrb[0].mxu0 %v72
    %v209 = vpop.f32.mrb[0].mxu0
    %v210 = vadd.f32 %v68, %v209
    %v211 = vpop.f32.mrb[0].mxu0
    %212 = vmatprep.mubr.f32.mxu0 0.0
    %213 = vmatmul.mubr.f32.gmra.mrb[0].mxu0 %v75
    %v214 = vpop.f32.mrb[0].mxu0
    %v215 = vadd.f32 %v68, %v214
    %v216 = vpop.f32.mrb[0].mxu0
    %217 = vmatprep.mubr.f32.mxu0 0.0
    %218 = vmatmul.mubr.f32.gmra.mrb[0].mxu0 %v78
    %v219 = vpop.f32.mrb[0].mxu0
    %v220 = vadd.f32 %v68, %v219
    %v221 = vpop.f32.mrb[0].mxu0
    %222 = vmatprep.mubr.f32.mxu0 0.0
    %223 = vmatmul.mubr.f32.gmra.mrb[0].mxu0 %v81
    %v224 = vpop.f32.mrb[0].mxu0
    %v225 = vadd.f32 %v68, %v224
    %v226 = vpop.f32.mrb[0].mxu0
    %227 = vmatprep.mubr.f32.mxu0 0.0
    %228 = vmatmul.mubr.f32.gmra.mrb[0].mxu0 %v84
    %v229 = vpop.f32.mrb[0].mxu0
    %v230 = vadd.f32 %v68, %v229
    %v231 = vpop.f32.mrb[0].mxu0
    %232 = vmatprep.mubr.f32.mxu0 0.0
    %233 = vmatmul.mubr.f32.gmra.mrb[0].mxu0 %v87
    %v234 = vpop.f32.mrb[0].mxu0
    %v235 = vadd.f32 %v68, %v234
    %v236 = vpop.f32.mrb[0].mxu0
    %237 = vmatprep.mubr.f32.mxu0 0.0
    %238 = vmatmul.mubr.f32.gmra.mrb[0].mxu0 %v90
    %v239 = vpop.f32.mrb[0].mxu0
    %v240 = vadd.f32 %v68, %v239
    %v241 = vpop.f32.mrb[0].mxu0
    %242 = vmatprep.mubr.f32.mxu0 0.0
    %243 = vmatmul.mubr.f32.gmra.mrb[0].mxu0 %v93
    %v244 = vpop.f32.mrb[0].mxu0
    %v245 = vadd.f32 %v68, %v244
    %v246 = vpop.f32.mrb[0].mxu0
    %247 = vmatprep.mubr.f32.mxu0 0.0
    %248 = vmatmul.mubr.f32.gmra.mrb[0].mxu0 %v96
    %v249 = vpop.f32.mrb[0].mxu0
    %v250 = vadd.f32 %v68, %v249
    %v251 = vpop.f32.mrb[0].mxu0
    %252 = vmatprep.mubr.f32.mxu0 0.0
    %253 = vmatmul.mubr.f32.gmra.mrb[0].mxu0 %v99
    %v254 = vpop.f32.mrb[0].mxu0
    %v255 = vadd.f32 %v68, %v254
    %v256 = vpop.f32.mrb[0].mxu0
    %257 = vmatprep.mubr.f32.mxu0 0.0
    %258 = vmatmul.mubr.f32.gmra.mrb[0].mxu0 %v102
    %v259 = vpop.f32.mrb[0].mxu0
    %v260 = vadd.f32 %v68, %v259
    %v261 = vpop.f32.mrb[0].mxu0
    %262 = vmatprep.mubr.f32.mxu0 0.0
    %263 = vmatmul.mubr.f32.gmra.mrb[0].mxu0 %v105
    %v264 = vpop.f32.mrb[0].mxu0
    %v265 = vadd.f32 %v68, %v264
    %v266 = vpop.f32.mrb[0].mxu0
    %267 = vmatprep.mubr.f32.mxu0 0.0
    %268 = vmatmul.mubr.f32.gmra.mrb[0].mxu0 %v108
    %v269 = vpop.f32.mrb[0].mxu0
    %v270 = vadd.f32 %v68, %v269
    %v271 = vpop.f32.mrb[0].mxu0
    %272 = vmatprep.mubr.f32.mxu0 0.0
    %273 = vmatmul.mubr.f32.gmra.mrb[0].mxu0 %v111
    %v274 = vpop.f32.mrb[0].mxu0
    %v275 = vadd.f32 %v68, %v274
    %v276 = vpop.f32.mrb[0].mxu0
    %277 = vmatprep.mubr.f32.mxu0 0.0
    %278 = vmatmul.mubr.f32.gmra.mrb[0].mxu0 %v114
    %v279 = vpop.f32.mrb[0].mxu0
    %v280 = vadd.f32 %v68, %v279
    %v281 = vpop.f32.mrb[0].mxu0
    %282 = vmatprep.mubr.f32.mxu0 0.0
    %283 = vmatmul.mubr.f32.gmra.mrb[0].mxu0 %v117
    %v284 = vpop.f32.mrb[0].mxu0
    %v285 = vadd.f32 %v68, %v284
    %v286 = vpop.f32.mrb[0].mxu0
    %287 = vmatprep.mubr.f32.mxu0 0.0
    %288 = vmatmul.mubr.f32.gmra.mrb[0].mxu0 %v120
    %v289 = vpop.f32.mrb[0].mxu0
    %v290 = vadd.f32 %v68, %v289
    %v291 = vpop.f32.mrb[0].mxu0
    %292 = vmatprep.mubr.f32.mxu0 0.0
    %293 = vmatmul.mubr.f32.gmra.mrb[0].mxu0 %v123
    %v294 = vpop.f32.mrb[0].mxu0
    %v295 = vadd.f32 %v68, %v294
    %v296 = vpop.f32.mrb[0].mxu0
    %297 = vmatprep.mubr.f32.mxu0 0.0
    %298 = vmatmul.mubr.f32.gmra.mrb[0].mxu0 %v126
    %v299 = vpop.f32.mrb[0].mxu0
    %v300 = vadd.f32 %v68, %v299
    %v301 = vpop.f32.mrb[0].mxu0
    %302 = vmatprep.mubr.f32.mxu0 0.0
    %303 = vmatmul.mubr.f32.gmra.mrb[0].mxu0 %v129
    %v304 = vpop.f32.mrb[0].mxu0
    %v305 = vadd.f32 %v68, %v304
    %v306 = vpop.f32.mrb[0].mxu0
    %307 = vmatprep.mubr.f32.mxu0 0.0
    %308 = vmatmul.mubr.f32.gmra.mrb[0].mxu0 %v132
    %v309 = vpop.f32.mrb[0].mxu0
    %v310 = vadd.f32 %v68, %v309
    %v311 = vpop.f32.mrb[0].mxu0
    %312 = vmatprep.mubr.f32.mxu0 0.0
    %313 = vmatmul.mubr.f32.gmra.mrb[0].mxu0 %v135
    %v314 = vpop.f32.mrb[0].mxu0
    %v315 = vadd.f32 %v68, %v314
    %v316 = vpop.f32.mrb[0].mxu0
    %317 = vmatprep.mubr.f32.mxu0 0.0
    %318 = vmatmul.mubr.f32.gmra.mrb[0].mxu0 %v138
    %v319 = vpop.f32.mrb[0].mxu0
    %v320 = vadd.f32 %v68, %v319
    %v321 = vpop.f32.mrb[0].mxu0
    %322 = vmatprep.mubr.f32.mxu0 0.0
    %323 = vmatmul.mubr.f32.gmra.mrb[0].mxu0 %v141
    %v324 = vpop.f32.mrb[0].mxu0
    %v325 = vadd.f32 %v68, %v324
    %v326 = vpop.f32.mrb[0].mxu0
    %327 = vdwg.mxu0
    %v328 = vmax.f32 %v210, 0.0
    %v329 = vmax.f32 %v215, 0.0
    %v330 = vmax.f32 %v220, 0.0
    %v331 = vmax.f32 %v225, 0.0
    %v332 = vmax.f32 %v230, 0.0
    %v333 = vmax.f32 %v235, 0.0
    %v334 = vmax.f32 %v240, 0.0
    %v335 = vmax.f32 %v245, 0.0
    %v336 = vmax.f32 %v250, 0.0
    %v337 = vmax.f32 %v255, 0.0
    %v338 = vmax.f32 %v260, 0.0
    %v339 = vmax.f32 %v265, 0.0
    %v340 = vmax.f32 %v270, 0.0
    %v341 = vmax.f32 %v275, 0.0
    %v342 = vmax.f32 %v280, 0.0
    %v343 = vmax.f32 %v285, 0.0
    %v344 = vmax.f32 %v290, 0.0
    %v345 = vmax.f32 %v295, 0.0
    %v346 = vmax.f32 %v300, 0.0
    %v347 = vmax.f32 %v305, 0.0
    %v348 = vmax.f32 %v310, 0.0
    %v349 = vmax.f32 %v315, 0.0
    %v350 = vmax.f32 %v320, 0.0
    %v351 = vmax.f32 %v325, 0.0
    %v352 = vld [vmem:[%s0] sm:$0xff]
    %v353 = vld [vmem:[%s0 + $0x8] sm:$0xff]
    %vm354 = vcmask 523264
    %v356 = vsel %vm354, %v353, 0
    %358 = vmatprep.subr.mxu0 0.0
    %359 = vmatpush1.msra.mxu0 %v328
    %360 = vmatprep.subr.mxu0 0.0
    %361 = vmatpush1.msra.mxu0 %v329
    %362 = vmatprep.subr.mxu0 0.0
    %363 = vmatpush1.msra.mxu0 %v330
    %364 = vmatprep.subr.mxu0 0.0
    %365 = vmatpush1.msra.mxu0 %v331
    %366 = vmatprep.subr.mxu0 0.0
    %367 = vmatpush1.msra.mxu0 %v332
    %368 = vmatprep.subr.mxu0 0.0
    %369 = vmatpush1.msra.mxu0 %v333
    %370 = vmatprep.subr.mxu0 0.0
    %371 = vmatpush1.msra.mxu0 %v334
    %372 = vmatprep.subr.mxu0 0.0
    %373 = vmatpush1.msra.mxu0 %v335
    %374 = vmatprep.subr.mxu0 0.0
    %375 = vmatpush1.msra.mxu0 %v336
    %376 = vmatprep.subr.mxu0 0.0
    %377 = vmatpush1.msra.mxu0 %v337
    %378 = vmatprep.subr.mxu0 0.0
    %379 = vmatpush1.msra.mxu0 %v338
    %380 = vmatprep.subr.mxu0 0.0
    %381 = vmatpush1.msra.mxu0 %v339
    %382 = vmatprep.subr.mxu0 0.0
    %383 = vmatpush1.msra.mxu0 %v340
    %384 = vmatprep.subr.mxu0 0.0
    %385 = vmatpush1.msra.mxu0 %v341
    %386 = vmatprep.subr.mxu0 0.0
    %387 = vmatpush1.msra.mxu0 %v342
    %388 = vmatprep.subr.mxu0 0.0
    %389 = vmatpush1.msra.mxu0 %v343
    %390 = vmatprep.subr.mxu0 0.0
    %391 = vmatpush1.msra.mxu0 %v344
    %392 = vmatprep.subr.mxu0 0.0
    %393 = vmatpush1.msra.mxu0 %v345
    %394 = vmatprep.subr.mxu0 0.0
    %395 = vmatpush1.msra.mxu0 %v346
    %396 = vmatprep.subr.mxu0 0.0
    %397 = vmatpush1.msra.mxu0 %v347
    %398 = vmatprep.subr.mxu0 0.0
    %399 = vmatpush1.msra.mxu0 %v348
    %400 = vmatprep.subr.mxu0 0.0
    %401 = vmatpush1.msra.mxu0 %v349
    %402 = vmatprep.subr.mxu0 0.0
    %403 = vmatpush1.msra.mxu0 %v350
    %404 = vmatprep.subr.mxu0 0.0
    %405 = vmatpush1.msra.mxu0 %v351
    %406 = vmatprep.subr.mxu0 0.0
    %407 = vmatpush1.msra.mxu0 0.0
    %408 = vmatprep.subr.mxu0 0.0
    %409 = vmatpush1.msra.mxu0 0.0
    %410 = vmatprep.subr.mxu0 0.0
    %411 = vmatpush1.msra.mxu0 0.0
    %412 = vmatprep.subr.mxu0 0.0
    %413 = vmatpush1.msra.mxu0 0.0
    %414 = vmatprep.subr.mxu0 0.0
    %415 = vmatpush1.msra.mxu0 0.0
    %416 = vmatprep.subr.mxu0 0.0
    %417 = vmatpush1.msra.mxu0 0.0
    %418 = vmatprep.subr.mxu0 0.0
    %419 = vmatpush1.msra.mxu0 0.0
    %420 = vmatprep.subr.mxu0 0.0
    %421 = vmatpush1.msra.mxu0 0.0
    %422 = vmatprep.mubr.f32.mxu0 %v356
    %423 = vmatmul.mubr.f32.gmra.mrb[0].mxu0 %v352
    %v424 = vpop.f32.mrb[0].mxu0
    %v425 = vadd.f32 0.0, %v424
    %v426 = vpop.f32.mrb[0].mxu0
    %427 = vdwg.mxu0
    %v428 = vld [vmem:[%s5] sm:$0xff]
    %v429 = vld [vmem:[%s5 + $0x8] sm:$0xff]
    %v430 = vld [vmem:[%s5 + $0x10] sm:$0xff]
    %v431 = vld [vmem:[%s5 + $0x18] sm:$0xff]
    %v432 = vld [vmem:[%s5 + $0x20] sm:$0xff]
    %v433 = vld [vmem:[%s5 + $0x28] sm:$0xff]
    %v434 = vld [vmem:[%s5 + $0x30] sm:$0xff]
    %v435 = vld [vmem:[%s5 + $0x38] sm:$0xff]
    %v436 = vld [vmem:[%s5 + $0x40] sm:$0xff]
    %v437 = vld [vmem:[%s5 + $0x48] sm:$0xff]
    %v438 = vld [vmem:[%s5 + $0x50] sm:$0xff]
    %v439 = vld [vmem:[%s5 + $0x58] sm:$0xff]
    %v440 = vld [vmem:[%s5 + $0x60] sm:$0xff]
    %v441 = vld [vmem:[%s5 + $0x68] sm:$0xff]
    %v442 = vld [vmem:[%s5 + $0x70] sm:$0xff]
    %v443 = vld [vmem:[%s5 + $0x78] sm:$0xff]
    %v444 = vld [vmem:[%s6] sm:$0x1]
    %v446 = vlaneseq
    %v447 = vshrl.u32 %v446, 7
    %v448 = vsub.s32 0, %v447
    %v449 = vrot.slane %v444, %v448
    %451 = vmatprep.subr.mxu0 0.0
    %452 = vmatpush1.msra.mxu0 %v428
    %453 = vmatprep.subr.mxu0 0.0
    %454 = vmatpush1.msra.mxu0 %v429
    %455 = vmatprep.subr.mxu0 0.0
    %456 = vmatpush1.msra.mxu0 %v430
    %457 = vmatprep.subr.mxu0 0.0
    %458 = vmatpush1.msra.mxu0 %v431
    %459 = vmatprep.subr.mxu0 0.0
    %460 = vmatpush1.msra.mxu0 %v432
    %461 = vmatprep.subr.mxu0 0.0
    %462 = vmatpush1.msra.mxu0 %v433
    %463 = vmatprep.subr.mxu0 0.0
    %464 = vmatpush1.msra.mxu0 %v434
    %465 = vmatprep.subr.mxu0 0.0
    %466 = vmatpush1.msra.mxu0 %v435
    %467 = vmatprep.subr.mxu0 0.0
    %468 = vmatpush1.msra.mxu0 %v436
    %469 = vmatprep.subr.mxu0 0.0
    %470 = vmatpush1.msra.mxu0 %v437
    %471 = vmatprep.subr.mxu0 0.0
    %472 = vmatpush1.msra.mxu0 %v438
    %473 = vmatprep.subr.mxu0 0.0
    %474 = vmatpush1.msra.mxu0 %v439
    %475 = vmatprep.subr.mxu0 0.0
    %476 = vmatpush1.msra.mxu0 %v440
    %477 = vmatprep.subr.mxu0 0.0
    %478 = vmatpush1.msra.mxu0 %v441
    %479 = vmatprep.subr.mxu0 0.0
    %480 = vmatpush1.msra.mxu0 %v442
    %481 = vmatprep.subr.mxu0 0.0
    %482 = vmatpush1.msra.mxu0 %v443
    %483 = vmatprep.subr.mxu0 0.0
    %484 = vmatpush1.msra.mxu0 0.0
    %485 = vmatprep.subr.mxu0 0.0
    %486 = vmatpush1.msra.mxu0 0.0
    %487 = vmatprep.subr.mxu0 0.0
    %488 = vmatpush1.msra.mxu0 0.0
    %489 = vmatprep.subr.mxu0 0.0
    %490 = vmatpush1.msra.mxu0 0.0
    %491 = vmatprep.subr.mxu0 0.0
    %492 = vmatpush1.msra.mxu0 0.0
    %493 = vmatprep.subr.mxu0 0.0
    %494 = vmatpush1.msra.mxu0 0.0
    %495 = vmatprep.subr.mxu0 0.0
    %496 = vmatpush1.msra.mxu0 0.0
    %497 = vmatprep.subr.mxu0 0.0
    %498 = vmatpush1.msra.mxu0 0.0
    %499 = vmatprep.subr.mxu0 0.0
    %500 = vmatpush1.msra.mxu0 0.0
    %501 = vmatprep.subr.mxu0 0.0
    %502 = vmatpush1.msra.mxu0 0.0
    %503 = vmatprep.subr.mxu0 0.0
    %504 = vmatpush1.msra.mxu0 0.0
    %505 = vmatprep.subr.mxu0 0.0
    %506 = vmatpush1.msra.mxu0 0.0
    %507 = vmatprep.subr.mxu0 0.0
    %508 = vmatpush1.msra.mxu0 0.0
    %509 = vmatprep.subr.mxu0 0.0
    %510 = vmatpush1.msra.mxu0 0.0
    %511 = vmatprep.subr.mxu0 0.0
    %512 = vmatpush1.msra.mxu0 0.0
    %513 = vmatprep.subr.mxu0 0.0
    %514 = vmatpush1.msra.mxu0 0.0
    %515 = vmatprep.mubr.f32.mxu0 0.0
    %516 = vmatmul.mubr.f32.gmra.mrb[0].mxu0 %v425
    %v517 = vpop.f32.mrb[0].mxu0
    %v518 = vadd.f32 %v449, %v517
    %v519 = vpop.f32.mrb[0].mxu0
    %520 = vdwg.mxu0
    %v521 = vmax.f32 %v518, 0.0
    %v522 = vld [vmem:[%s7] sm:$0x1]
    %v524 = vlaneseq
    %v525 = vshrl.u32 %v524, 7
    %v526 = vsub.s32 0, %v525
    %v527 = vrot.slane %v522, %v526
    %v529 = vmul.f32 %v521, %v527
    %530 = vadd.xlane.f32.xlu0 %v529
    %v531 = vpop.xlane.xlu0 %530
    %v532 = vld [vmem:[#allocation2] sm:$0x1]
    %v534 = vlaneseq
    %v535 = vshrl.u32 %v534, 7
    %v536 = vsub.s32 0, %v535
    %v537 = vrot.slane %v532, %v536
    %v539 = vadd.f32 %v531, %v537
    %v540 = vld [vmem:[%s1] sm:$0xff]
    %v541 = vmul.f32 %v540, %v539
    %vm542 = vcmask 7168
    %v543 = vsel %vm542, %v541, 0.0
    %v544 = vrot.slane %v543, 4
    %v545 = vadd.f32 %v543, %v544
    %v546 = vrot.slane %v545, 2
    %v547 = vadd.f32 %v545, %v546
    %v548 = vrot.slane %v547, 1
    %v549 = vadd.f32 %v547, %v548
    %vm550 = vcmask 0
    %551 = vst.msk [vmem:[#allocation3] sm:$0x1] %vm550, %v549
    // Predicated region
    $region38: #{_forward_impl.1} parent=1 // pred_check
      _
    $region39: #{_forward_impl.1} parent=1 // pred_check_branch
      %553 = sbr.rel (0) target = $region41
    $region40: #{_forward_impl.1} parent=1 // pred_region
      %s555 = ssub.s32 16, 16
      %556 = vsyncadd [#allocation4], %s555
      %s558 = sshll.u32 [#allocation3], 4
      %s559 = int_to_ptr.vmem [resolvable:$true] %s558
      %561 = dma.vmem_to_hbm [thread:$0]  %s559, 16, %s9, [#allocation4]
    $region41: #{_forward_impl.1} parent=1 // pred_fallthru
      _
    // Predicated region
    $region42: #{_forward_impl.1} parent=1 // pred_check
      _
    $region43: #{_forward_impl.1} parent=1 // pred_check_branch
      %563 = sbr.rel (0) target = $region45
    $region44: #{_forward_impl.1} parent=1 // pred_region
      %564 = dma.done [#allocation4], 16
    $region45: #{_forward_impl.1} parent=1 // pred_fallthru
      _
    %565 = vsyncpa [#allocation4], 1

</llo_original>
